<compile_context>
chip_gen: v7x
topology: tpu7x:2x2x1
jax: 0.10.0
libtpu: 0.0.40
codegen_flags: <defaults>
</compile_context>

<pallas_src>
import jax
import jax.numpy as jnp
from jax.experimental import pallas as pl
from jax.experimental.pallas import tpu as pltpu


def _round_up(x, m):
    return (x + m - 1) // m * m


# --------------------------------------------------------------------------
# Parameter construction (hoisted out of forward; done once).
# --------------------------------------------------------------------------
def make_sparse_params(key, n_items, input_size, output_size,
                       compute_dtype=jnp.bfloat16):
    """Deterministic equivalent of SparseModule.__init__, plus all per-weight
    preprocessing:
      - densify directly as Wt = W.T (scatter-add; duplicates accumulate, matching
        torch.sparse.mm)
      - zero-pad to (Kp, Np) tile multiples and cast to compute_dtype ONCE
      - build block-sparsity metadata (nonzero (tk, tn) block list per output column).
    """
    kx, ky, kv = jax.random.split(key, 3)
    idx_xs = jax.random.randint(kx, (n_items,), 0, input_size)   # column of W == row of Wt
    idx_ys = jax.random.randint(ky, (n_items,), 0, output_size)  # row of W == column of Wt
    vals = jax.random.normal(kv, (n_items,), dtype=jnp.float32)

    # Tile plan for the weight (lane dims multiples of 128).
    tk = min(1024, _round_up(input_size, 128))
    tn = min(512, _round_up(output_size, 128))
    # v7x: prefer >=2 blocks along the parallel N axis so both TensorCores get work.
    if _round_up(output_size, tn) // tn < 2 and _round_up(output_size, 128) >= 256:
        tn = max(128, _round_up(_round_up(output_size, 128) // 2, 128))
    Kp = _round_up(input_size, tk)
    Np = _round_up(output_size, tn)

    # Densify straight into the padded buffer, then cast once to compute dtype.
    wt_p = jnp.zeros((Kp, Np), jnp.float32)
    wt_p = wt_p.at[idx_xs, idx_ys].add(vals)          # Wt[x, y] += v  (== W.T)
    wt_p = wt_p.astype(compute_dtype)

    # Block occupancy -> compacted per-column (j) list of nonzero k-blocks.
    n_kb, n_jb = Kp // tk, Np // tn
    occ = jnp.any(wt_p.reshape(n_kb, tk, n_jb, tn) != 0, axis=(1, 3))   # (n_kb, n_jb)
    counts = occ.sum(axis=0).astype(jnp.int32)                           # (n_jb,)
    n_steps = max(1, int(counts.max()))
    order = jnp.argsort(~occ, axis=0, stable=True)     # nonzero block indices first
    kidx_full = order.T.astype(jnp.int32)              # (n_jb, n_kb)
    # Pad positions repeat the last valid index -> revisited block => no extra DMA.
    pos = jnp.minimum(jnp.arange(n_steps)[None, :],
                      jnp.maximum(counts - 1, 0)[:, None])
    kidx = jnp.take_along_axis(kidx_full, pos, axis=1)  # (n_jb, n_steps)

    return dict(
        wt_p=wt_p, kidx=kidx, counts=counts,
        input_size=input_size, output_size=output_size,
        tk=tk, tn=tn, Kp=Kp, Np=Np, n_kb=n_kb, n_steps=n_steps,
        nnz_blocks=int(counts.sum()),
        compute_dtype=compute_dtype,
    )


# --------------------------------------------------------------------------
# Kernels
# --------------------------------------------------------------------------
def _mm_block_sparse_kernel(kidx_ref, counts_ref, x_ref, wt_ref, o_ref, acc_ref):
    # Grid: (i over batch tiles, j over output-column tiles, s over nonzero k-blocks)
    j = pl.program_id(1)
    s = pl.program_id(2)

    @pl.when(s == 0)
    def _init():
        acc_ref[...] = jnp.zeros_like(acc_ref)

    # Skip padded steps (columns with fewer nonzero k-blocks than the max).
    @pl.when(s < counts_ref[j])
    def _accum():
        acc_ref[...] += jnp.dot(x_ref[...], wt_ref[...],
                                preferred_element_type=jnp.float32)

    @pl.when(s == pl.num_programs(2) - 1)
    def _store():
        o_ref[...] = acc_ref[...].astype(o_ref.dtype)


def _mm_single_k_kernel(x_ref, wt_ref, o_ref):
    # Whole K fits in one block: no reduction axis, no accumulator, no branches.
    o_ref[...] = jnp.dot(x_ref[...], wt_ref[...],
                         preferred_element_type=jnp.float32).astype(o_ref.dtype)


# --------------------------------------------------------------------------
# Forward
# --------------------------------------------------------------------------
def sparse_module_forward(params, x):
    """x: (B, input_size) -> (B, output_size) f32; == x @ W.T == (W @ x.T).T."""
    assert x.ndim == 2
    B, in_sz = x.shape
    assert in_sz == params["input_size"]
    out_sz = params["output_size"]
    wt_p = params["wt_p"]
    tk, tn = params["tk"], params["tn"]
    Kp, Np = params["Kp"], params["Np"]
    cdt = params["compute_dtype"]

    tm = min(256, _round_up(B, 8))
    Bp = _round_up(B, tm)

    # Pad/cast x only when strictly needed (cast folded into the pad).
    if Bp != B or Kp != in_sz:
        x_p = jnp.zeros((Bp, Kp), cdt).at[:B, :in_sz].set(x.astype(cdt))
    else:
        x_p = x.astype(cdt)

    itm = jnp.dtype(cdt).itemsize
    vmem_limit = 40 * 1024 * 1024   # explicit; well under v7x's 64 MiB physical VMEM
    n_i, n_j = Bp // tm, Np // tn

    if params["n_kb"] == 1:
        # Degenerate reduction: all-parallel grid, direct store, no scratch.
        out_p = pl.pallas_call(
            _mm_single_k_kernel,
            out_shape=jax.ShapeDtypeStruct((Bp, Np), jnp.float32),
            grid=(n_i, n_j),
            in_specs=[
                pl.BlockSpec((tm, Kp), lambda i, j: (i, 0)),
                pl.BlockSpec((Kp, tn), lambda i, j: (0, j)),
            ],
            out_specs=pl.BlockSpec((tm, tn), lambda i, j: (i, j)),
            compiler_params=pltpu.CompilerParams(
                dimension_semantics=("parallel", "parallel"),
                vmem_limit_bytes=vmem_limit,
            ),
            cost_estimate=pl.CostEstimate(
                flops=2 * Bp * Kp * Np,
                transcendentals=0,
                bytes_accessed=Bp * Kp * itm + Kp * Np * itm + Bp * Np * 4,
            ),
        )(x_p, wt_p)
    else:
        S = params["n_steps"]
        nnz = params["nnz_blocks"]
        out_p = pl.pallas_call(
            _mm_block_sparse_kernel,
            out_shape=jax.ShapeDtypeStruct((Bp, Np), jnp.float32),
            grid_spec=pltpu.PrefetchScalarGridSpec(
                num_scalar_prefetch=2,          # kidx (n_jb, S) and counts (n_jb,)
                grid=(n_i, n_j, S),
                in_specs=[
                    # x tile follows the same compacted k-block index as the weight.
                    pl.BlockSpec((tm, tk),
                                 lambda i, j, s, kidx, counts: (i, kidx[j, s])),
                    # NOTE: could add pipeline_mode=pl.Buffered(3) here if profiling
                    # shows exposed weight DMA at large tk/tn.
                    pl.BlockSpec((tk, tn),
                                 lambda i, j, s, kidx, counts: (kidx[j, s], j)),
                ],
                out_specs=pl.BlockSpec((tm, tn),
                                       lambda i, j, s, kidx, counts: (i, j)),
                scratch_shapes=[pltpu.VMEM((tm, tn), jnp.float32)],
            ),
            compiler_params=pltpu.CompilerParams(
                dimension_semantics=("parallel", "parallel", "arbitrary"),
                vmem_limit_bytes=vmem_limit,
            ),
            cost_estimate=pl.CostEstimate(
                flops=2 * Bp * tk * tn * max(nnz, 1),
                transcendentals=0,
                bytes_accessed=(n_j * Bp * Kp * itm
                                + max(nnz, 1) * tk * tn * itm
                                + Bp * Np * 4),
            ),
        )(params["kidx"], params["counts"], x_p, wt_p)

    return out_p[:B, :out_sz]


# --------------------------------------------------------------------------
# Self-test
# --------------------------------------------------------------------------
if __name__ == "__main__":
    key = jax.random.PRNGKey(0)
    k_w, k_x, k_w2, k_x2 = jax.random.split(key, 4)

    # --- Test 1: small shapes, f32 escape hatch (bit-parity path) ------------
    n_items, input_size, output_size, batch = 64, 32, 48, 8
    p_f32 = make_sparse_params(k_w, n_items, input_size, output_size,
                               compute_dtype=jnp.float32)
    x = jax.random.normal(k_x, (batch, input_size), dtype=jnp.float32)
    out = jax.block_until_ready(sparse_module_forward(p_f32, x))
    ref = x @ p_f32["wt_p"][:input_size, :output_size]
    assert out.shape == (batch, output_size)
    assert jnp.allclose(out, ref, atol=1e-5, rtol=1e-5)

    # --- Test 2: same shapes, default bf16 operand path ----------------------
    p_bf16 = make_sparse_params(k_w, n_items, input_size, output_size)
    out2 = jax.block_until_ready(sparse_module_forward(p_bf16, x))
    ref2 = (x.astype(jnp.bfloat16).astype(jnp.float32)
            @ p_bf16["wt_p"][:input_size, :output_size].astype(jnp.float32))
    assert jnp.allclose(out2, ref2, atol=1e-3, rtol=1e-3)

    # --- Test 3: multi-K-block shape -> exercises block-sparse skip path -----
    n_items3, in3, out3, b3 = 200, 2560, 384, 16
    p3 = make_sparse_params(k_w2, n_items3, in3, out3)         # bf16 default
    x3 = jax.random.normal(k_x2, (b3, in3), dtype=jnp.float32)
    out3_v = jax.block_until_ready(sparse_module_forward(p3, x3))
    ref3 = (x3.astype(jnp.bfloat16).astype(jnp.float32)
            @ p3["wt_p"][:in3, :out3].astype(jnp.float32))
    assert out3_v.shape == (b3, out3)
    assert jnp.allclose(out3_v, ref3, atol=1e-3, rtol=1e-3)

    print("KERNEL_OK")
</pallas_src>

<mosaic_0001>
module attributes {stable_mosaic.version = 11 : i64} {
  func.func @_mm_single_k_kernel(%arg0: i32, %arg1: i32, %arg2: memref<8x128xf32, #tpu.memory_space<vmem>>, %arg3: memref<128x128xf32, #tpu.memory_space<vmem>>, %arg4: memref<8x128xf32, #tpu.memory_space<vmem>>) attributes {dimension_semantics = [#tpu.dimension_semantics<parallel>, #tpu.dimension_semantics<parallel>], iteration_bounds = array<i64: 1, 1>, scalar_prefetch = 0 : i64, scratch_operands = 0 : i64, tpu.core_type = #tpu.core_type<tc>, window_params = [{transform_indices = @transform_0, window_bounds = array<i64: 8, 128>}, {transform_indices = @transform_1, window_bounds = array<i64: 128, 128>}, {transform_indices = @transform_2, window_bounds = array<i64: 8, 128>}]} {
    %c0 = arith.constant 0 : index
    %c0_0 = arith.constant 0 : index
    %0 = vector.load %arg2[%c0, %c0_0] : memref<8x128xf32, #tpu.memory_space<vmem>>, vector<8x128xf32>
    %c0_1 = arith.constant 0 : index
    %c0_2 = arith.constant 0 : index
    %1 = vector.load %arg3[%c0_1, %c0_2] : memref<128x128xf32, #tpu.memory_space<vmem>>, vector<128x128xf32>
    %cst = arith.constant dense<0.000000e+00> : vector<8x128xf32>
    %2 = tpu.matmul %0, %1, %cst {dimension_numbers = #tpu.dot_dimension_numbers<[1], [0], [0], [1], [0, 0, 1, 1], [], []>} : vector<8x128xf32>, vector<128x128xf32>, vector<8x128xf32> -> vector<8x128xf32>
    %c0_3 = arith.constant 0 : index
    %c0_4 = arith.constant 0 : index
    %3 = vector.load %arg4[%c0_3, %c0_4] : memref<8x128xf32, #tpu.memory_space<vmem>>, vector<8x128xf32>
    tpu.vector_store %arg4[%c0_3, %c0_4], %2 {strides = array<i32>} : memref<8x128xf32, #tpu.memory_space<vmem>>, vector<8x128xf32>,
    return
  }
  func.func @transform_0(%arg0: i32, %arg1: i32) -> (i32, i32) {
    %c0_i32 = arith.constant 0 : i32
    %c0_i32_0 = arith.constant 0 : i32
    return %arg0, %c0_i32 : i32, i32
  }
  func.func @transform_1(%arg0: i32, %arg1: i32) -> (i32, i32) {
    %c0_i32 = arith.constant 0 : i32
    %c0_i32_0 = arith.constant 0 : i32
    return %c0_i32, %arg1 : i32, i32
  }
  func.func @transform_2(%arg0: i32, %arg1: i32) -> (i32, i32) {
    %c0_i32 = arith.constant 0 : i32
    return %arg0, %arg1 : i32, i32
  }
}

</mosaic_0001>

<llo_original>
// kernel: tpu_custom_call.1
$region0: #{tpu_custom_call.1}
  #allocation0 [shape = 'u32[]', space=smem, size = 0x4, offset = 0x4, fixed_abs, tag = 'smem constant byte address 0x4 - core index']
  #allocation1 [shape = 'u32[144,128]{1,0:T(1,128)}', space=vmem, size = 0x12000, scoped, tag = 'internal scratch']
  %s0 = inlined_call_operand.hbm [shape: f32[8,128], index: 0, kind: input, shape index: {}]
  %s1 = inlined_call_operand.hbm [shape: f32[128,128], index: 1, kind: input, shape index: {}]
  %s2 = inlined_call_operand.hbm [shape: f32[8,128], index: 2, kind: output, shape index: {}]
  %s3 = sld [smem:[#allocation0]]
  $region26: #{tpu_custom_call.1} parent=0
    _
  %s5 = ssub.s32 1, %s3
  %s6 = scalar_select 0, %s5, %s3
  $region1: #{tpu_custom_call.1} parent=0
    #allocation2 [shape = 'u8[4096]{0}', space=vmem, size = 0x1000, scoped, tag = 'input window, operand 0, single buffered']
    #allocation3 [shape = 's32[1]{0}', space=sflag, size = 0x4, scoped, tag = 'scoped memory for tpu_custom_call.1']
    #allocation4 [shape = 's32[1]{0}', space=sflag, size = 0x4, scoped, tag = 'scoped memory for tpu_custom_call.1']
    #allocation5 [shape = 'u8[65536]{0}', space=vmem, size = 0x10000, scoped, tag = 'input window, operand 1, single buffered']
    #allocation6 [shape = 's32[1]{0}', space=sflag, size = 0x4, scoped, tag = 'scoped memory for tpu_custom_call.1']
    #allocation7 [shape = 'u8[4096]{0}', space=vmem, size = 0x1000, scoped, tag = 'output window, operand 0, single buffered']
    %7 = vsyncpa [#allocation3], 0
    %8 = vsyncpa [#allocation6], 0
    %9 = vsyncpa [#allocation4], 0
    // Predicated region
    $region2: #{tpu_custom_call.1} parent=1 // pred_check
      _
    $region3: #{tpu_custom_call.1} parent=1 // pred_check_branch
      %11 = sbr.rel (0) target = $region5
    $region4: #{tpu_custom_call.1} parent=1 // pred_region
      %s13 = ssub.s32 128, 128
      %14 = vsyncadd [#allocation3], %s13
      %s16 = sshll.u32 [#allocation2], 4
      %s17 = int_to_ptr.vmem [resolvable:$true] %s16
      %19 = dma.hbm_to_vmem [thread:$0]  %s0, 128, %s17, [#allocation3]
    $region5: #{tpu_custom_call.1} parent=1 // pred_fallthru
      _
    // Predicated region
    $region6: #{tpu_custom_call.1} parent=1 // pred_check
      _
    $region7: #{tpu_custom_call.1} parent=1 // pred_check_branch
      %21 = sbr.rel (0) target = $region9
    $region8: #{tpu_custom_call.1} parent=1 // pred_region
      %s23 = ssub.s32 2048, 2048
      %24 = vsyncadd [#allocation6], %s23
      %s25 = sshll.u32 [#allocation5], 4
      %s26 = int_to_ptr.vmem [resolvable:$true] %s25
      %31 = dma.hbm_to_vmem [thread:$0]  %s1, 2048, %s26, [#allocation6], 128, 128, 8
    $region9: #{tpu_custom_call.1} parent=1 // pred_fallthru
      _
    // Predicated region
    $region10: #{tpu_custom_call.1} parent=1 // pred_check
      _
    $region11: #{tpu_custom_call.1} parent=1 // pred_check_branch
      %33 = sbr.rel (0) target = $region13
    $region12: #{tpu_custom_call.1} parent=1 // pred_region
      %34 = dma.done [#allocation3], 128
    $region13: #{tpu_custom_call.1} parent=1 // pred_fallthru
      _
    // Predicated region
    $region14: #{tpu_custom_call.1} parent=1 // pred_check
      _
    $region15: #{tpu_custom_call.1} parent=1 // pred_check_branch
      %36 = sbr.rel (0) target = $region17
    $region16: #{tpu_custom_call.1} parent=1 // pred_region
      %37 = dma.done [#allocation6], 2048
    $region17: #{tpu_custom_call.1} parent=1 // pred_fallthru
      _
    %v38 = vld [vmem:[#allocation2] sm:$0xff]
    %v39 = vld [vmem:[#allocation5] sm:$0xff]
    %v40 = vld [vmem:[#allocation5 + $0x8] sm:$0xff]
    %v41 = vld [vmem:[#allocation5 + $0x10] sm:$0xff]
    %v42 = vld [vmem:[#allocation5 + $0x18] sm:$0xff]
    %v43 = vld [vmem:[#allocation5 + $0x20] sm:$0xff]
    %v44 = vld [vmem:[#allocation5 + $0x28] sm:$0xff]
    %v45 = vld [vmem:[#allocation5 + $0x30] sm:$0xff]
    %v46 = vld [vmem:[#allocation5 + $0x38] sm:$0xff]
    %v47 = vld [vmem:[#allocation5 + $0x40] sm:$0xff]
    %v48 = vld [vmem:[#allocation5 + $0x48] sm:$0xff]
    %v49 = vld [vmem:[#allocation5 + $0x50] sm:$0xff]
    %v50 = vld [vmem:[#allocation5 + $0x58] sm:$0xff]
    %v51 = vld [vmem:[#allocation5 + $0x60] sm:$0xff]
    %v52 = vld [vmem:[#allocation5 + $0x68] sm:$0xff]
    %v53 = vld [vmem:[#allocation5 + $0x70] sm:$0xff]
    %v54 = vld [vmem:[#allocation5 + $0x78] sm:$0xff]
    %55 = vmatprep.subr.mxu0 0.0
    %56 = vmatpush1.msra.mxu0 %v39
    %57 = vmatprep.subr.mxu0 0.0
    %58 = vmatpush1.msra.mxu0 %v40
    %59 = vmatprep.subr.mxu0 0.0
    %60 = vmatpush1.msra.mxu0 %v41
    %61 = vmatprep.subr.mxu0 0.0
    %62 = vmatpush1.msra.mxu0 %v42
    %63 = vmatprep.subr.mxu0 0.0
    %64 = vmatpush1.msra.mxu0 %v43
    %65 = vmatprep.subr.mxu0 0.0
    %66 = vmatpush1.msra.mxu0 %v44
    %67 = vmatprep.subr.mxu0 0.0
    %68 = vmatpush1.msra.mxu0 %v45
    %69 = vmatprep.subr.mxu0 0.0
    %70 = vmatpush1.msra.mxu0 %v46
    %71 = vmatprep.subr.mxu0 0.0
    %72 = vmatpush1.msra.mxu0 %v47
    %73 = vmatprep.subr.mxu0 0.0
    %74 = vmatpush1.msra.mxu0 %v48
    %75 = vmatprep.subr.mxu0 0.0
    %76 = vmatpush1.msra.mxu0 %v49
    %77 = vmatprep.subr.mxu0 0.0
    %78 = vmatpush1.msra.mxu0 %v50
    %79 = vmatprep.subr.mxu0 0.0
    %80 = vmatpush1.msra.mxu0 %v51
    %81 = vmatprep.subr.mxu0 0.0
    %82 = vmatpush1.msra.mxu0 %v52
    %83 = vmatprep.subr.mxu0 0.0
    %84 = vmatpush1.msra.mxu0 %v53
    %85 = vmatprep.subr.mxu0 0.0
    %86 = vmatpush1.msra.mxu0 %v54
    %87 = vmatprep.subr.mxu0 0.0
    %88 = vmatpush1.msra.mxu0 0.0
    %89 = vmatprep.subr.mxu0 0.0
    %90 = vmatpush1.msra.mxu0 0.0
    %91 = vmatprep.subr.mxu0 0.0
    %92 = vmatpush1.msra.mxu0 0.0
    %93 = vmatprep.subr.mxu0 0.0
    %94 = vmatpush1.msra.mxu0 0.0
    %95 = vmatprep.subr.mxu0 0.0
    %96 = vmatpush1.msra.mxu0 0.0
    %97 = vmatprep.subr.mxu0 0.0
    %98 = vmatpush1.msra.mxu0 0.0
    %99 = vmatprep.subr.mxu0 0.0
    %100 = vmatpush1.msra.mxu0 0.0
    %101 = vmatprep.subr.mxu0 0.0
    %102 = vmatpush1.msra.mxu0 0.0
    %103 = vmatprep.subr.mxu0 0.0
    %104 = vmatpush1.msra.mxu0 0.0
    %105 = vmatprep.subr.mxu0 0.0
    %106 = vmatpush1.msra.mxu0 0.0
    %107 = vmatprep.subr.mxu0 0.0
    %108 = vmatpush1.msra.mxu0 0.0
    %109 = vmatprep.subr.mxu0 0.0
    %110 = vmatpush1.msra.mxu0 0.0
    %111 = vmatprep.subr.mxu0 0.0
    %112 = vmatpush1.msra.mxu0 0.0
    %113 = vmatprep.subr.mxu0 0.0
    %114 = vmatpush1.msra.mxu0 0.0
    %115 = vmatprep.subr.mxu0 0.0
    %116 = vmatpush1.msra.mxu0 0.0
    %117 = vmatprep.subr.mxu0 0.0
    %118 = vmatpush1.msra.mxu0 0.0
    %119 = vmatprep.mubr.f32.mxu0 0.0
    %120 = vmatmul.mubr.f32.gmra.mrb[0].mxu0 %v38
    %v121 = vpop.f32.mrb[0].mxu0
    %v122 = vadd.f32 0.0, %v121
    %v123 = vpop.f32.mrb[0].mxu0
    %124 = vdwg.mxu0
    %125 = vst [vmem:[#allocation7] sm:$0xff] %v122
    // Predicated region
    $region18: #{tpu_custom_call.1} parent=1 // pred_check
      _
    $region19: #{tpu_custom_call.1} parent=1 // pred_check_branch
      %127 = sbr.rel (0) target = $region21
    $region20: #{tpu_custom_call.1} parent=1 // pred_region
      %s129 = ssub.s32 128, 128
      %130 = vsyncadd [#allocation4], %s129
      %s132 = sshll.u32 [#allocation7], 4
      %s133 = int_to_ptr.vmem [resolvable:$true] %s132
      %135 = dma.vmem_to_hbm [thread:$0]  %s133, 128, %s2, [#allocation4]
    $region21: #{tpu_custom_call.1} parent=1 // pred_fallthru
      _
    // Predicated region
    $region22: #{tpu_custom_call.1} parent=1 // pred_check
      _
    $region23: #{tpu_custom_call.1} parent=1 // pred_check_branch
      %137 = sbr.rel (0) target = $region25
    $region24: #{tpu_custom_call.1} parent=1 // pred_region
      %138 = dma.done [#allocation4], 128
    $region25: #{tpu_custom_call.1} parent=1 // pred_fallthru
      _
    %139 = vsyncpa [#allocation3], 1
    %140 = vsyncpa [#allocation6], 1
    %141 = vsyncpa [#allocation4], 1

</llo_original>
